<compile_context>
chip_gen: v7x
topology: tpu7x:2x2x1
jax: 0.10.0
libtpu: 0.0.40
codegen_flags: <defaults>
</compile_context>

<pallas_src>
import functools

import jax
import jax.numpy as jnp
from jax import lax
from jax.experimental import pallas as pl
from jax.experimental.pallas import tpu as pltpu

WIDTH = 9                 # conv kernel width (1 x 9)
PAD = (WIDTH - 1) // 2    # = 4
BN_EPS = 1e-5

VMEM_LIMIT_BYTES = 56 * 1024 * 1024   # < 64 MiB (v7x physical), leaves headroom
VMEM_BUDGET_BYTES = 40 * 1024 * 1024  # target per-step footprint for BR choice


def speech_basic_block_kernel(x_ref, w1_ref, b1_ref, w2_ref, b2_ref,
                              o_ref, xpad_ref, tmp_ref, *, per_tap):
    """One grid step: BR rows of (N*H), full time axis, all channels.

    x_ref   : (BR, T, Cin)   f32   unpadded input rows (also the residual)
    w1_ref  : (9*Cin, Cout)  bf16  conv1 weights, im2col layout, BN1 scale folded
    b1_ref  : (1, Cout)      f32   BN1 folded bias
    w2_ref  : (9*Cout, Cout) bf16  conv2 weights, im2col layout, BN2 scale folded
    b2_ref  : (1, Cout)      f32   BN2 folded bias
    o_ref   : (BR, T, Cout)  f32   output rows
    xpad_ref: (BR, T+2*PAD, Cin)  bf16 VMEM scratch (time-padded input)
    tmp_ref : (BR, T+2*PAD, Cout) bf16 VMEM scratch (time-padded intermediate)
    """
    BR, T, Cin = x_ref.shape
    Cout = o_ref.shape[2]

    x = x_ref[...]                                   # f32; also the residual

    # Zero the PAD borders.  Kept per-step (not @pl.when(program_id==0)):
    # with a "parallel" grid axis each TensorCore has a private scratch copy
    # and only one core ever executes step 0.  Interior is fully overwritten.
    xpad_ref[:, :PAD, :] = jnp.zeros((BR, PAD, Cin), xpad_ref.dtype)
    xpad_ref[:, PAD + T:, :] = jnp.zeros((BR, PAD, Cin), xpad_ref.dtype)
    tmp_ref[:, :PAD, :] = jnp.zeros((BR, PAD, Cout), tmp_ref.dtype)
    tmp_ref[:, PAD + T:, :] = jnp.zeros((BR, PAD, Cout), tmp_ref.dtype)

    # single bf16 cast of the input into the padded scratch
    xpad_ref[:, PAD:PAD + T, :] = x.astype(xpad_ref.dtype)

    def conv(src_ref, w_ref, cin):
        """9-tap conv along time as MXU matmul(s); bf16 operands, f32 acc."""
        if per_tap:
            # wide layers: 9 accumulated matmuls, no im2col temp at all
            acc = jnp.zeros((BR * T, Cout), jnp.float32)
            for k in range(WIDTH):
                lhs = src_ref[:, k:k + T, :].reshape(BR * T, cin)
                acc = acc + jnp.dot(lhs, w_ref[k * cin:(k + 1) * cin, :],
                                    preferred_element_type=jnp.float32)
            return acc
        # narrow layers: single packed im2col matmul (cols stay bf16)
        cols = jnp.concatenate(
            [src_ref[:, k:k + T, :] for k in range(WIDTH)], axis=-1)
        return jnp.dot(cols.reshape(BR * T, WIDTH * cin), w_ref[...],
                       preferred_element_type=jnp.float32)

    # ---- conv1 (BN1 scale folded into w1) + bias + relu ----
    out1 = jnp.maximum(conv(xpad_ref, w1_ref, Cin) + b1_ref[...], 0.0)
    tmp_ref[:, PAD:PAD + T, :] = out1.reshape(BR, T, Cout).astype(tmp_ref.dtype)

    # ---- conv2 (BN2 scale folded into w2) + bias + residual + relu ----
    out2 = (conv(tmp_ref, w2_ref, Cout) + b2_ref[...]).reshape(BR, T, Cout)
    o_ref[...] = jnp.maximum(out2 + x, 0.0).astype(o_ref.dtype)


def fold_bn(gamma, beta, mean, var, eps=BN_EPS):
    scale = gamma / jnp.sqrt(var + eps)
    bias = beta - mean * scale
    return scale.astype(jnp.float32), bias.astype(jnp.float32)


@functools.partial(jax.jit, static_argnames=("row_block",))
def speech_basic_block(x_nchw, w1_oihw, w2_oihw, bn1_params, bn2_params,
                       *, row_block=8):
    """x_nchw: (N, Cin, H, T) float32; conv weights in PyTorch OIHW with H=1."""
    N, Cin, H, T = x_nchw.shape
    Cout = w1_oihw.shape[0]
    # stride=1, downsample=None => residual add requires matching channels.
    assert Cin == Cout, "SpeechBasicBlock residual requires inplanes == planes"

    # glue: NCHW -> channels-last rows (N*H, T, C); chain blocks in this
    # layout to amortize the transposes.
    x_rows = jnp.transpose(x_nchw, (0, 2, 3, 1)).reshape(N * H, T, Cin)

    s1, b1 = fold_bn(*bn1_params)
    s2, b2 = fold_bn(*bn2_params)

    # conv weights (Cout, Cin, 1, W) -> im2col layout (W*Cin, Cout) with the
    # BN scale folded into the output-channel columns, then bf16.
    w1 = (jnp.transpose(w1_oihw[:, :, 0, :], (2, 1, 0))
          .reshape(WIDTH * Cin, Cout) * s1[None, :]).astype(jnp.bfloat16)
    w2 = (jnp.transpose(w2_oihw[:, :, 0, :], (2, 1, 0))
          .reshape(WIDTH * Cout, Cout) * s2[None, :]).astype(jnp.bfloat16)
    b1 = b1.reshape(1, Cout)
    b2 = b2.reshape(1, Cout)

    B = N * H
    Tp = T + 2 * PAD

    # ---- BR selection: fit a ~40 MiB per-step budget, keep >=2 grid steps ----
    def step_vmem_bytes(br):
        act = br * T * (Cin + Cout) * 4 * 2        # f32 in/out blocks, 2-buffered
        scr = br * Tp * (Cin + Cout) * 2           # bf16 scratches
        wts = (WIDTH * Cin + WIDTH * Cout) * Cout * 2 * 2
        return act + scr + wts

    BR = max(1, min(row_block, B))
    while BR > 1 and step_vmem_bytes(BR) > VMEM_BUDGET_BYTES:
        BR = (BR + 1) // 2
    if B > 1:
        BR = min(BR, pl.cdiv(B, 2))   # >=2 parallel steps (v7x has 2 TCs)

    per_tap = Cin >= 256   # per-tap K fills a 256-deep MXU pass; else keep im2col

    kernel = functools.partial(speech_basic_block_kernel, per_tap=per_tap)

    out_rows = pl.pallas_call(
        kernel,
        out_shape=jax.ShapeDtypeStruct((B, T, Cout), jnp.float32),
        grid=(pl.cdiv(B, BR),),
        in_specs=[
            pl.BlockSpec((BR, T, Cin), lambda b: (b, 0, 0)),          # x rows
            pl.BlockSpec((WIDTH * Cin, Cout), lambda b: (0, 0)),      # w1 (resident)
            pl.BlockSpec((1, Cout), lambda b: (0, 0)),                # bn1 bias
            pl.BlockSpec((WIDTH * Cout, Cout), lambda b: (0, 0)),     # w2 (resident)
            pl.BlockSpec((1, Cout), lambda b: (0, 0)),                # bn2 bias
        ],
        out_specs=pl.BlockSpec((BR, T, Cout), lambda b: (b, 0, 0)),
        scratch_shapes=[pltpu.VMEM((BR, Tp, Cin), jnp.bfloat16),
                        pltpu.VMEM((BR, Tp, Cout), jnp.bfloat16)],
        compiler_params=pltpu.CompilerParams(
            dimension_semantics=("parallel",),
            vmem_limit_bytes=VMEM_LIMIT_BYTES),
    )(x_rows, w1, b1, w2, b2)

    # glue: back to NCHW
    out = out_rows.reshape(N, H, T, Cout)
    return jnp.transpose(out, (0, 3, 1, 2))


# ------------------------- pure-JAX reference (NCHW) -------------------------
def _bn_ref(x, gamma, beta, mean, var, eps=BN_EPS):
    c = x.shape[1]
    sh = (1, c, 1, 1)
    return (x - mean.reshape(sh)) / jnp.sqrt(var.reshape(sh) + eps) \
        * gamma.reshape(sh) + beta.reshape(sh)


def speech_basic_block_ref(x, w1, w2, bn1_params, bn2_params):
    dn = ('NCHW', 'OIHW', 'NCHW')
    out = lax.conv_general_dilated(x, w1, (1, 1), ((0, 0), (PAD, PAD)),
                                   dimension_numbers=dn)
    out = jnp.maximum(_bn_ref(out, *bn1_params), 0.0)
    out = lax.conv_general_dilated(out, w2, (1, 1), ((0, 0), (PAD, PAD)),
                                   dimension_numbers=dn)
    out = _bn_ref(out, *bn2_params)
    return jnp.maximum(out + x, 0.0)


if __name__ == "__main__":
    key = jax.random.PRNGKey(0)
    k_x, k_w1, k_w2, k_g1, k_b1, k_m1, k_v1, k_g2, k_b2, k_m2, k_v2 = \
        jax.random.split(key, 11)

    N, C, H, T = 2, 32, 1, 16      # inplanes == planes == 32 (stride 1, no downsample)

    x = jax.random.normal(k_x, (N, C, H, T), dtype=jnp.float32)

    fan_in = C * WIDTH
    w1 = jax.random.normal(k_w1, (C, C, 1, WIDTH), jnp.float32) / jnp.sqrt(fan_in)
    w2 = jax.random.normal(k_w2, (C, C, 1, WIDTH), jnp.float32) / jnp.sqrt(fan_in)

    bn1_params = (1.0 + 0.1 * jax.random.normal(k_g1, (C,), jnp.float32),   # gamma
                  0.1 * jax.random.normal(k_b1, (C,), jnp.float32),         # beta
                  0.1 * jax.random.normal(k_m1, (C,), jnp.float32),         # running mean
                  1.0 + 0.1 * jax.random.uniform(k_v1, (C,), jnp.float32))  # running var
    bn2_params = (1.0 + 0.1 * jax.random.normal(k_g2, (C,), jnp.float32),
                  0.1 * jax.random.normal(k_b2, (C,), jnp.float32),
                  0.1 * jax.random.normal(k_m2, (C,), jnp.float32),
                  1.0 + 0.1 * jax.random.uniform(k_v2, (C,), jnp.float32))

    out = speech_basic_block(x, w1, w2, bn1_params, bn2_params)
    out = jax.block_until_ready(out)

    ref = jax.block_until_ready(
        speech_basic_block_ref(x, w1, w2, bn1_params, bn2_params))

    assert out.shape == (N, C, H, T), out.shape
    # bf16 MXU operands / bf16 intermediate with f32 accumulation => relaxed
    # tolerance vs the f32 reference.
    assert jnp.allclose(out, ref, atol=3e-2, rtol=3e-2), \
        float(jnp.max(jnp.abs(out - ref)))

    print("KERNEL_OK")
</pallas_src>

<mosaic_0001>
module attributes {stable_mosaic.version = 11 : i64} {
  func.func @speech_basic_block_kernel(%arg0: i32, %arg1: memref<1x16x32xf32, #tpu.memory_space<vmem>>, %arg2: memref<288x32xbf16, #tpu.memory_space<vmem>>, %arg3: memref<1x32xf32, #tpu.memory_space<vmem>>, %arg4: memref<288x32xbf16, #tpu.memory_space<vmem>>, %arg5: memref<1x32xf32, #tpu.memory_space<vmem>>, %arg6: memref<1x16x32xf32, #tpu.memory_space<vmem>>, %arg7: memref<1x24x32xbf16, #tpu.memory_space<vmem>>, %arg8: memref<1x24x32xbf16, #tpu.memory_space<vmem>>) attributes {dimension_semantics = [#tpu.dimension_semantics<parallel>], iteration_bounds = array<i64: 2>, scalar_prefetch = 0 : i64, scratch_operands = 2 : i64, tpu.core_type = #tpu.core_type<tc>, window_params = [{transform_indices = @transform_0, window_bounds = array<i64: 1, 16, 32>}, {pipeline_mode = #tpu.pipeline_mode<synchronous>, transform_indices = @transform_1, window_bounds = array<i64: 288, 32>}, {pipeline_mode = #tpu.pipeline_mode<synchronous>, transform_indices = @transform_2, window_bounds = array<i64: 1, 32>}, {pipeline_mode = #tpu.pipeline_mode<synchronous>, transform_indices = @transform_3, window_bounds = array<i64: 288, 32>}, {pipeline_mode = #tpu.pipeline_mode<synchronous>, transform_indices = @transform_4, window_bounds = array<i64: 1, 32>}, {transform_indices = @transform_5, window_bounds = array<i64: 1, 16, 32>}]} {
    %c0 = arith.constant 0 : index
    %c0_0 = arith.constant 0 : index
    %c0_1 = arith.constant 0 : index
    %0 = vector.load %arg1[%c0, %c0_0, %c0_1] : memref<1x16x32xf32, #tpu.memory_space<vmem>>, vector<1x16x32xf32>
    %cst = arith.constant 0.000000e+00 : bf16
    %1 = vector.broadcast %cst : bf16 to vector<1x4x32xbf16>
    %c0_2 = arith.constant 0 : index
    %c0_3 = arith.constant 0 : index
    %c0_4 = arith.constant 0 : index
    %2 = vector.load %arg7[%c0_2, %c0_3, %c0_4] : memref<1x24x32xbf16, #tpu.memory_space<vmem>>, vector<1x4x32xbf16>
    tpu.vector_store %arg7[%c0_2, %c0_3, %c0_4], %1 {strides = array<i32>} : memref<1x24x32xbf16, #tpu.memory_space<vmem>>, vector<1x4x32xbf16>,
    %cst_5 = arith.constant 0.000000e+00 : bf16
    %3 = vector.broadcast %cst_5 : bf16 to vector<1x4x32xbf16>
    %c0_6 = arith.constant 0 : index
    %c20 = arith.constant 20 : index
    %c0_7 = arith.constant 0 : index
    %4 = vector.load %arg7[%c0_6, %c20, %c0_7] : memref<1x24x32xbf16, #tpu.memory_space<vmem>>, vector<1x4x32xbf16>
    tpu.vector_store %arg7[%c0_6, %c20, %c0_7], %3 {strides = array<i32>} : memref<1x24x32xbf16, #tpu.memory_space<vmem>>, vector<1x4x32xbf16>,
    %cst_8 = arith.constant 0.000000e+00 : bf16
    %5 = vector.broadcast %cst_8 : bf16 to vector<1x4x32xbf16>
    %c0_9 = arith.constant 0 : index
    %c0_10 = arith.constant 0 : index
    %c0_11 = arith.constant 0 : index
    %6 = vector.load %arg8[%c0_9, %c0_10, %c0_11] : memref<1x24x32xbf16, #tpu.memory_space<vmem>>, vector<1x4x32xbf16>
    tpu.vector_store %arg8[%c0_9, %c0_10, %c0_11], %5 {strides = array<i32>} : memref<1x24x32xbf16, #tpu.memory_space<vmem>>, vector<1x4x32xbf16>,
    %cst_12 = arith.constant 0.000000e+00 : bf16
    %7 = vector.broadcast %cst_12 : bf16 to vector<1x4x32xbf16>
    %c0_13 = arith.constant 0 : index
    %c20_14 = arith.constant 20 : index
    %c0_15 = arith.constant 0 : index
    %8 = vector.load %arg8[%c0_13, %c20_14, %c0_15] : memref<1x24x32xbf16, #tpu.memory_space<vmem>>, vector<1x4x32xbf16>
    tpu.vector_store %arg8[%c0_13, %c20_14, %c0_15], %7 {strides = array<i32>} : memref<1x24x32xbf16, #tpu.memory_space<vmem>>, vector<1x4x32xbf16>,
    %9 = arith.truncf %0 : vector<1x16x32xf32> to vector<1x16x32xbf16>
    %c0_16 = arith.constant 0 : index
    %c4 = arith.constant 4 : index
    %c0_17 = arith.constant 0 : index
    %10 = vector.load %arg7[%c0_16, %c4, %c0_17] : memref<1x24x32xbf16, #tpu.memory_space<vmem>>, vector<1x16x32xbf16>
    tpu.vector_store %arg7[%c0_16, %c4, %c0_17], %9 {strides = array<i32>} : memref<1x24x32xbf16, #tpu.memory_space<vmem>>, vector<1x16x32xbf16>,
    %c0_18 = arith.constant 0 : index
    %c0_19 = arith.constant 0 : index
    %c0_20 = arith.constant 0 : index
    %11 = vector.load %arg7[%c0_18, %c0_19, %c0_20] : memref<1x24x32xbf16, #tpu.memory_space<vmem>>, vector<1x16x32xbf16>
    %c0_21 = arith.constant 0 : index
    %c1 = arith.constant 1 : index
    %c0_22 = arith.constant 0 : index
    %12 = vector.load %arg7[%c0_21, %c1, %c0_22] : memref<1x24x32xbf16, #tpu.memory_space<vmem>>, vector<1x16x32xbf16>
    %c0_23 = arith.constant 0 : index
    %c2 = arith.constant 2 : index
    %c0_24 = arith.constant 0 : index
    %13 = vector.load %arg7[%c0_23, %c2, %c0_24] : memref<1x24x32xbf16, #tpu.memory_space<vmem>>, vector<1x16x32xbf16>
    %c0_25 = arith.constant 0 : index
    %c3 = arith.constant 3 : index
    %c0_26 = arith.constant 0 : index
    %14 = vector.load %arg7[%c0_25, %c3, %c0_26] : memref<1x24x32xbf16, #tpu.memory_space<vmem>>, vector<1x16x32xbf16>
    %c0_27 = arith.constant 0 : index
    %c4_28 = arith.constant 4 : index
    %c0_29 = arith.constant 0 : index
    %15 = vector.load %arg7[%c0_27, %c4_28, %c0_29] : memref<1x24x32xbf16, #tpu.memory_space<vmem>>, vector<1x16x32xbf16>
    %c0_30 = arith.constant 0 : index
    %c5 = arith.constant 5 : index
    %c0_31 = arith.constant 0 : index
    %16 = vector.load %arg7[%c0_30, %c5, %c0_31] : memref<1x24x32xbf16, #tpu.memory_space<vmem>>, vector<1x16x32xbf16>
    %c0_32 = arith.constant 0 : index
    %c6 = arith.constant 6 : index
    %c0_33 = arith.constant 0 : index
    %17 = vector.load %arg7[%c0_32, %c6, %c0_33] : memref<1x24x32xbf16, #tpu.memory_space<vmem>>, vector<1x16x32xbf16>
    %c0_34 = arith.constant 0 : index
    %c7 = arith.constant 7 : index
    %c0_35 = arith.constant 0 : index
    %18 = vector.load %arg7[%c0_34, %c7, %c0_35] : memref<1x24x32xbf16, #tpu.memory_space<vmem>>, vector<1x16x32xbf16>
    %c0_36 = arith.constant 0 : index
    %c8 = arith.constant 8 : index
    %c0_37 = arith.constant 0 : index
    %19 = vector.load %arg7[%c0_36, %c8, %c0_37] : memref<1x24x32xbf16, #tpu.memory_space<vmem>>, vector<1x16x32xbf16>
    %20 = tpu.concatenate %11, %12, %13, %14, %15, %16, %17, %18, %19 in 2 : vector<1x16x32xbf16>, vector<1x16x32xbf16>, vector<1x16x32xbf16>, vector<1x16x32xbf16>, vector<1x16x32xbf16>, vector<1x16x32xbf16>, vector<1x16x32xbf16>, vector<1x16x32xbf16>, vector<1x16x32xbf16> -> vector<1x16x288xbf16>
    %21 = vector.shape_cast %20 : vector<1x16x288xbf16> to vector<16x288xbf16>
    %c0_38 = arith.constant 0 : index
    %c0_39 = arith.constant 0 : index
    %22 = vector.load %arg2[%c0_38, %c0_39] : memref<288x32xbf16, #tpu.memory_space<vmem>>, vector<288x32xbf16>
    %cst_40 = arith.constant dense<0.000000e+00> : vector<16x32xf32>
    %23 = tpu.matmul %21, %22, %cst_40 {dimension_numbers = #tpu.dot_dimension_numbers<[1], [0], [0], [1], [0, 0, 1, 1], [], []>} : vector<16x288xbf16>, vector<288x32xbf16>, vector<16x32xf32> -> vector<16x32xf32>
    %c0_41 = arith.constant 0 : index
    %c0_42 = arith.constant 0 : index
    %24 = vector.load %arg3[%c0_41, %c0_42] : memref<1x32xf32, #tpu.memory_space<vmem>>, vector<1x32xf32>
    %25 = vector.broadcast %24 : vector<1x32xf32> to vector<16x32xf32>
    %26 = arith.addf %23, %25 : vector<16x32xf32>
    %cst_43 = arith.constant 0.000000e+00 : f32
    %27 = vector.broadcast %cst_43 : f32 to vector<16x32xf32>
    %28 = arith.maximumf %26, %27 : vector<16x32xf32>
    %29 = vector.shape_cast %28 : vector<16x32xf32> to vector<1x16x32xf32>
    %30 = arith.truncf %29 : vector<1x16x32xf32> to vector<1x16x32xbf16>
    %c0_44 = arith.constant 0 : index
    %c4_45 = arith.constant 4 : index
    %c0_46 = arith.constant 0 : index
    %31 = vector.load %arg8[%c0_44, %c4_45, %c0_46] : memref<1x24x32xbf16, #tpu.memory_space<vmem>>, vector<1x16x32xbf16>
    tpu.vector_store %arg8[%c0_44, %c4_45, %c0_46], %30 {strides = array<i32>} : memref<1x24x32xbf16, #tpu.memory_space<vmem>>, vector<1x16x32xbf16>,
    %c0_47 = arith.constant 0 : index
    %c0_48 = arith.constant 0 : index
    %c0_49 = arith.constant 0 : index
    %32 = vector.load %arg8[%c0_47, %c0_48, %c0_49] : memref<1x24x32xbf16, #tpu.memory_space<vmem>>, vector<1x16x32xbf16>
    %c0_50 = arith.constant 0 : index
    %c1_51 = arith.constant 1 : index
    %c0_52 = arith.constant 0 : index
    %33 = vector.load %arg8[%c0_50, %c1_51, %c0_52] : memref<1x24x32xbf16, #tpu.memory_space<vmem>>, vector<1x16x32xbf16>
    %c0_53 = arith.constant 0 : index
    %c2_54 = arith.constant 2 : index
    %c0_55 = arith.constant 0 : index
    %34 = vector.load %arg8[%c0_53, %c2_54, %c0_55] : memref<1x24x32xbf16, #tpu.memory_space<vmem>>, vector<1x16x32xbf16>
    %c0_56 = arith.constant 0 : index
    %c3_57 = arith.constant 3 : index
    %c0_58 = arith.constant 0 : index
    %35 = vector.load %arg8[%c0_56, %c3_57, %c0_58] : memref<1x24x32xbf16, #tpu.memory_space<vmem>>, vector<1x16x32xbf16>
    %c0_59 = arith.constant 0 : index
    %c4_60 = arith.constant 4 : index
    %c0_61 = arith.constant 0 : index
    %36 = vector.load %arg8[%c0_59, %c4_60, %c0_61] : memref<1x24x32xbf16, #tpu.memory_space<vmem>>, vector<1x16x32xbf16>
    %c0_62 = arith.constant 0 : index
    %c5_63 = arith.constant 5 : index
    %c0_64 = arith.constant 0 : index
    %37 = vector.load %arg8[%c0_62, %c5_63, %c0_64] : memref<1x24x32xbf16, #tpu.memory_space<vmem>>, vector<1x16x32xbf16>
    %c0_65 = arith.constant 0 : index
    %c6_66 = arith.constant 6 : index
    %c0_67 = arith.constant 0 : index
    %38 = vector.load %arg8[%c0_65, %c6_66, %c0_67] : memref<1x24x32xbf16, #tpu.memory_space<vmem>>, vector<1x16x32xbf16>
    %c0_68 = arith.constant 0 : index
    %c7_69 = arith.constant 7 : index
    %c0_70 = arith.constant 0 : index
    %39 = vector.load %arg8[%c0_68, %c7_69, %c0_70] : memref<1x24x32xbf16, #tpu.memory_space<vmem>>, vector<1x16x32xbf16>
    %c0_71 = arith.constant 0 : index
    %c8_72 = arith.constant 8 : index
    %c0_73 = arith.constant 0 : index
    %40 = vector.load %arg8[%c0_71, %c8_72, %c0_73] : memref<1x24x32xbf16, #tpu.memory_space<vmem>>, vector<1x16x32xbf16>
    %41 = tpu.concatenate %32, %33, %34, %35, %36, %37, %38, %39, %40 in 2 : vector<1x16x32xbf16>, vector<1x16x32xbf16>, vector<1x16x32xbf16>, vector<1x16x32xbf16>, vector<1x16x32xbf16>, vector<1x16x32xbf16>, vector<1x16x32xbf16>, vector<1x16x32xbf16>, vector<1x16x32xbf16> -> vector<1x16x288xbf16>
    %42 = vector.shape_cast %41 : vector<1x16x288xbf16> to vector<16x288xbf16>
    %c0_74 = arith.constant 0 : index
    %c0_75 = arith.constant 0 : index
    %43 = vector.load %arg4[%c0_74, %c0_75] : memref<288x32xbf16, #tpu.memory_space<vmem>>, vector<288x32xbf16>
    %cst_76 = arith.constant dense<0.000000e+00> : vector<16x32xf32>
    %44 = tpu.matmul %42, %43, %cst_76 {dimension_numbers = #tpu.dot_dimension_numbers<[1], [0], [0], [1], [0, 0, 1, 1], [], []>} : vector<16x288xbf16>, vector<288x32xbf16>, vector<16x32xf32> -> vector<16x32xf32>
    %c0_77 = arith.constant 0 : index
    %c0_78 = arith.constant 0 : index
    %45 = vector.load %arg5[%c0_77, %c0_78] : memref<1x32xf32, #tpu.memory_space<vmem>>, vector<1x32xf32>
    %46 = vector.broadcast %45 : vector<1x32xf32> to vector<16x32xf32>
    %47 = arith.addf %44, %46 : vector<16x32xf32>
    %48 = vector.shape_cast %47 : vector<16x32xf32> to vector<1x16x32xf32>
    %49 = arith.addf %48, %0 : vector<1x16x32xf32>
    %cst_79 = arith.constant 0.000000e+00 : f32
    %50 = vector.broadcast %cst_79 : f32 to vector<1x16x32xf32>
    %51 = arith.maximumf %49, %50 : vector<1x16x32xf32>
    %c0_80 = arith.constant 0 : index
    %c0_81 = arith.constant 0 : index
    %c0_82 = arith.constant 0 : index
    %52 = vector.load %arg6[%c0_80, %c0_81, %c0_82] : memref<1x16x32xf32, #tpu.memory_space<vmem>>, vector<1x16x32xf32>
    tpu.vector_store %arg6[%c0_80, %c0_81, %c0_82], %51 {strides = array<i32>} : memref<1x16x32xf32, #tpu.memory_space<vmem>>, vector<1x16x32xf32>,
    return
  }
  func.func @transform_0(%arg0: i32) -> (i32, i32, i32) {
    %c0_i32 = arith.constant 0 : i32
    %c0_i32_0 = arith.constant 0 : i32
    %c0_i32_1 = arith.constant 0 : i32
    return %arg0, %c0_i32, %c0_i32_0 : i32, i32, i32
  }
  func.func @transform_1(%arg0: i32) -> (i32, i32) {
    %c0_i32 = arith.constant 0 : i32
    %c0_i32_0 = arith.constant 0 : i32
    %c0_i32_1 = arith.constant 0 : i32
    return %c0_i32, %c0_i32_0 : i32, i32
  }
  func.func @transform_2(%arg0: i32) -> (i32, i32) {
    %c0_i32 = arith.constant 0 : i32
    %c0_i32_0 = arith.constant 0 : i32
    %c0_i32_1 = arith.constant 0 : i32
    return %c0_i32, %c0_i32_0 : i32, i32
  }
  func.func @transform_3(%arg0: i32) -> (i32, i32) {
    %c0_i32 = arith.constant 0 : i32
    %c0_i32_0 = arith.constant 0 : i32
    %c0_i32_1 = arith.constant 0 : i32
    return %c0_i32, %c0_i32_0 : i32, i32
  }
  func.func @transform_4(%arg0: i32) -> (i32, i32) {
    %c0_i32 = arith.constant 0 : i32
    %c0_i32_0 = arith.constant 0 : i32
    %c0_i32_1 = arith.constant 0 : i32
    return %c0_i32, %c0_i32_0 : i32, i32
  }
  func.func @transform_5(%arg0: i32) -> (i32, i32, i32) {
    %c0_i32 = arith.constant 0 : i32
    %c0_i32_0 = arith.constant 0 : i32
    %c0_i32_1 = arith.constant 0 : i32
    return %arg0, %c0_i32, %c0_i32_0 : i32, i32, i32
  }
}

</mosaic_0001>

<llo_original>
// kernel: speech_basic_block.1
$region0: #{speech_basic_block.1}
  #allocation0 [shape = 'u32[]', space=smem, size = 0x4, offset = 0x4, fixed_abs, tag = 'smem constant byte address 0x4 - core index']
  #allocation1 [shape = 'u32[144,128]{1,0:T(1,128)}', space=vmem, size = 0x12000, scoped, tag = 'internal scratch']
  #allocation2 [shape = 'bf16[1,24,32]{2,1,0:T(8,128)(2,1)}', space=vmem, size = 0x1800, scoped, tag = 'scratch operand']
  #allocation3 [shape = 'bf16[1,24,32]{2,1,0:T(8,128)(2,1)}', space=vmem, size = 0x1800, scoped, tag = 'scratch operand']
  %s0 = inlined_call_operand.vmem [shape: f32[2,16,32], index: 0, kind: input, shape index: {}]
  %s1 = inlined_call_operand.vmem [shape: bf16[288,32], index: 1, kind: input, shape index: {}]
  %s2 = inlined_call_operand.vmem [shape: f32[1,32], index: 2, kind: input, shape index: {}]
  %s3 = inlined_call_operand.vmem [shape: bf16[288,32], index: 3, kind: input, shape index: {}]
  %s4 = inlined_call_operand.vmem [shape: f32[1,32], index: 4, kind: input, shape index: {}]
  %s5 = inlined_call_operand.hbm [shape: f32[2,16,32], index: 5, kind: output, shape index: {}]
  %s6 = sld [smem:[#allocation0]]
  $region53: #{speech_basic_block.1} parent=0
    _
  %s8 = ssub.s32 1, %s6
  %s9 = scalar_select 0, %s8, %s6
  $region1: #{speech_basic_block.1} parent=0
    #allocation4 [shape = 'u8[16384]{0}', space=vmem, size = 0x4000, scoped, tag = 'output window, operand 0']
    #allocation5 [shape = 's32[2]{0}', space=sflag, size = 0x8, scoped, tag = 'scoped memory for speech_basic_block.1']
    %10 = vsyncpa [#allocation5], 0
    %s11 = scalar_lea.sflag [#allocation5], 1
    %12 = vsyncpa %s11, 0
    loop: start=0, step=1, limit=4
    $region2: #{speech_basic_block.1} parent=1 // loop_pre_header
      _
    $region3: #{speech_basic_block.1} parent=1 // loop_header
      %s14 = sphi 0, %s18
      %p15 = scmp.ge.s32.totalorder %s14, 4
      %s24 = sphi 0, %s26
      %s27 = sphi 0, %s24
      %s28 = sphi 0, %s27
      %s44 = sphi 0, %s28
      %s48 = sphi 0, %s48
      %s50 = sphi 0, %s48
      %s51 = sphi 0, %s50
      %s65 = sphi 0, %s51
      %s69 = sphi 0, %s69
      %s71 = sphi 0, %s69
      %s72 = sphi 0, %s71
      %s86 = sphi 0, %s72
      %s90 = sphi 0, %s90
      %s92 = sphi 0, %s90
      %s93 = sphi 0, %s92
      %s107 = sphi 0, %s93
      %s111 = sphi 0, %s111
      %s113 = sphi 0, %s111
      %s114 = sphi 0, %s113
      %s128 = sphi 0, %s114
      %s134 = sphi 0, %s136
      %s137 = sphi 0, %s134
      %s138 = sphi 0, %s137
      %s154 = sphi 0, %s138
    $region4: #{speech_basic_block.1} parent=1 // loop_header_branch
      %17 = sbr.rel (%p15) target = $region8
    $region5: #{speech_basic_block.1} parent=1 // loop_body
      %s19 = ssub.s32 %s14, 1
      %s20 = ssub.s32 %s14, 2
      %s21 = sadd.s32 %s14, 1
      %s22 = ssub.s32 %s14, %s21
      %p23 = scmp.eq.s32.totalorder %s22, 0
      %s25 = sadd.s32 %s24, 1
      %s26 = scalar_select %p23, %s24, %s25
      %p29 = pneg %p23
      %p30 = scmp.eq.s32.totalorder %s14, 1
      %p31 = por %p29, %p30
      %p32 = scmp.ne.s32.totalorder %s24, %s27
      %p33 = scmp.eq.s32.totalorder %s14, 0
      %p34 = por %p32, %p33
      %p35 = scmp.ne.s32.totalorder %s24, %s27
      %p36 = scmp.eq.s32.totalorder %s19, 1
      %p37 = por %p35, %p36
      %p38 = scmp.ne.s32.totalorder %s27, %s28
      %p39 = scmp.eq.s32.totalorder %s19, 0
      %p40 = por %p38, %p39
      %p41 = scmp.ne.s32.totalorder %s27, %s28
      %p42 = scmp.eq.s32.totalorder %s20, 1
      %p43 = por %p41, %p42
      %p45 = scmp.ne.s32.totalorder %s28, %s44
      %p46 = scmp.eq.s32.totalorder %s20, 0
      %p47 = por %p45, %p46
      %s49 = sadd.s32 %s48, 1
      %p52 = scmp.eq.s32.totalorder %s14, 1
      %p53 = scmp.ne.s32.totalorder %s48, %s50
      %p54 = scmp.eq.s32.totalorder %s14, 0
      %p55 = por %p53, %p54
      %p56 = scmp.ne.s32.totalorder %s48, %s50
      %p57 = scmp.eq.s32.totalorder %s19, 1
      %p58 = por %p56, %p57
      %p59 = scmp.ne.s32.totalorder %s50, %s51
      %p60 = scmp.eq.s32.totalorder %s19, 0
      %p61 = por %p59, %p60
      %p62 = scmp.ne.s32.totalorder %s50, %s51
      %p63 = scmp.eq.s32.totalorder %s20, 1
      %p64 = por %p62, %p63
      %p66 = scmp.ne.s32.totalorder %s51, %s65
      %p67 = scmp.eq.s32.totalorder %s20, 0
      %p68 = por %p66, %p67
      %s70 = sadd.s32 %s69, 1
      %p73 = scmp.eq.s32.totalorder %s14, 1
      %p74 = scmp.ne.s32.totalorder %s69, %s71
      %p75 = scmp.eq.s32.totalorder %s14, 0
      %p76 = por %p74, %p75
      %p77 = scmp.ne.s32.totalorder %s69, %s71
      %p78 = scmp.eq.s32.totalorder %s19, 1
      %p79 = por %p77, %p78
      %p80 = scmp.ne.s32.totalorder %s71, %s72
      %p81 = scmp.eq.s32.totalorder %s19, 0
      %p82 = por %p80, %p81
      %p83 = scmp.ne.s32.totalorder %s71, %s72
      %p84 = scmp.eq.s32.totalorder %s20, 1
      %p85 = por %p83, %p84
      %p87 = scmp.ne.s32.totalorder %s72, %s86
      %p88 = scmp.eq.s32.totalorder %s20, 0
      %p89 = por %p87, %p88
      %s91 = sadd.s32 %s90, 1
      %p94 = scmp.eq.s32.totalorder %s14, 1
      %p95 = scmp.ne.s32.totalorder %s90, %s92
      %p96 = scmp.eq.s32.totalorder %s14, 0
      %p97 = por %p95, %p96
      %p98 = scmp.ne.s32.totalorder %s90, %s92
      %p99 = scmp.eq.s32.totalorder %s19, 1
      %p100 = por %p98, %p99
      %p101 = scmp.ne.s32.totalorder %s92, %s93
      %p102 = scmp.eq.s32.totalorder %s19, 0
      %p103 = por %p101, %p102
      %p104 = scmp.ne.s32.totalorder %s92, %s93
      %p105 = scmp.eq.s32.totalorder %s20, 1
      %p106 = por %p104, %p105
      %p108 = scmp.ne.s32.totalorder %s93, %s107
      %p109 = scmp.eq.s32.totalorder %s20, 0
      %p110 = por %p108, %p109
      %s112 = sadd.s32 %s111, 1
      %p115 = scmp.eq.s32.totalorder %s14, 1
      %p116 = scmp.ne.s32.totalorder %s111, %s113
      %p117 = scmp.eq.s32.totalorder %s14, 0
      %p118 = por %p116, %p117
      %p119 = scmp.ne.s32.totalorder %s111, %s113
      %p120 = scmp.eq.s32.totalorder %s19, 1
      %p121 = por %p119, %p120
      %p122 = scmp.ne.s32.totalorder %s113, %s114
      %p123 = scmp.eq.s32.totalorder %s19, 0
      %p124 = por %p122, %p123
      %p125 = scmp.ne.s32.totalorder %s113, %s114
      %p126 = scmp.eq.s32.totalorder %s20, 1
      %p127 = por %p125, %p126
      %p129 = scmp.ne.s32.totalorder %s114, %s128
      %p130 = scmp.eq.s32.totalorder %s20, 0
      %p131 = por %p129, %p130
      %s132 = ssub.s32 %s14, %s21
      %p133 = scmp.eq.s32.totalorder %s132, 0
      %s135 = sadd.s32 %s134, 1
      %s136 = scalar_select %p133, %s134, %s135
      %p139 = pneg %p133
      %p140 = scmp.eq.s32.totalorder %s14, 1
      %p141 = por %p139, %p140
      %p142 = scmp.ne.s32.totalorder %s134, %s137
      %p143 = scmp.eq.s32.totalorder %s14, 0
      %p144 = por %p142, %p143
      %p145 = scmp.ne.s32.totalorder %s134, %s137
      %p146 = scmp.eq.s32.totalorder %s19, 1
      %p147 = por %p145, %p146
      %p148 = scmp.ne.s32.totalorder %s137, %s138
      %p149 = scmp.eq.s32.totalorder %s19, 0
      %p150 = por %p148, %p149
      %p151 = scmp.ne.s32.totalorder %s137, %s138
      %p152 = scmp.eq.s32.totalorder %s20, 1
      %p153 = por %p151, %p152
      %p155 = scmp.ne.s32.totalorder %s138, %s154
      %p156 = scmp.eq.s32.totalorder %s20, 0
      %p157 = por %p155, %p156
      %p158 = scmp.le.s32.totalorder 1, %s14
      %p159 = scmp.lt.s32.totalorder %s14, 3
      %p160 = pnand %p158, %p159
      %p161 = pneg %p160
      // Predicated region
      $region9: #{speech_basic_block.1} parent=5 // pred_check
        _
      $region10: #{speech_basic_block.1} parent=5 // pred_check_branch
        %163 = sbr.rel (%p160) target = $region12
      $region11: #{speech_basic_block.1} parent=5 // pred_region
        %s164 = ssub.s32 %s14, 1
        // Predicated region
        $region13: #{speech_basic_block.1} parent=11 // pred_check
          %p165 = pneg %p61
        $region14: #{speech_basic_block.1} parent=11 // pred_check_branch
          %167 = sbr.rel (%p165) target = $region16
        $region15: #{speech_basic_block.1} parent=11 // pred_region
          _
        $region16: #{speech_basic_block.1} parent=11 // pred_fallthru
          _
        // Predicated region
        $region17: #{speech_basic_block.1} parent=11 // pred_check
          %p168 = pneg %p82
        $region18: #{speech_basic_block.1} parent=11 // pred_check_branch
          %170 = sbr.rel (%p168) target = $region20
        $region19: #{speech_basic_block.1} parent=11 // pred_region
          _
        $region20: #{speech_basic_block.1} parent=11 // pred_fallthru
          _
        // Predicated region
        $region21: #{speech_basic_block.1} parent=11 // pred_check
          %p171 = pneg %p103
        $region22: #{speech_basic_block.1} parent=11 // pred_check_branch
          %173 = sbr.rel (%p171) target = $region24
        $region23: #{speech_basic_block.1} parent=11 // pred_region
          _
        $region24: #{speech_basic_block.1} parent=11 // pred_fallthru
          _
        // Predicated region
        $region25: #{speech_basic_block.1} parent=11 // pred_check
          %p174 = pneg %p124
        $region26: #{speech_basic_block.1} parent=11 // pred_check_branch
          %176 = sbr.rel (%p174) target = $region28
        $region27: #{speech_basic_block.1} parent=11 // pred_region
          _
        $region28: #{speech_basic_block.1} parent=11 // pred_fallthru
          _
      $region12: #{speech_basic_block.1} parent=5 // pred_fallthru
        _
      %p177 = scmp.lt.s32.totalorder %s14, 2
      // Predicated region
      $region29: #{speech_basic_block.1} parent=5 // pred_check
        %p178 = pneg %p177
      $region30: #{speech_basic_block.1} parent=5 // pred_check_branch
        %180 = sbr.rel (%p178) target = $region32
      $region31: #{speech_basic_block.1} parent=5 // pred_region
        // Predicated region
        $region33: #{speech_basic_block.1} parent=31 // pred_check
          %p181 = pneg %p34
        $region34: #{speech_basic_block.1} parent=31 // pred_check_branch
          %183 = sbr.rel (%p181) target = $region36
        $region35: #{speech_basic_block.1} parent=31 // pred_region
          %p184 = scmp.lt.s32.totalorder %s14, 1
          %s185 = scalar_select %p184, %s14, 1
          %s186 = smul.addr %s185, 2
          %s187 = smul.addr %s186, 8
          %s188 = scalar_lea.vmem %s0, %s187
        $region36: #{speech_basic_block.1} parent=31 // pred_fallthru
          _
      $region32: #{speech_basic_block.1} parent=5 // pred_fallthru
        _
      %p189 = scmp.le.s32.totalorder 1, %s14
      %p190 = scmp.lt.s32.totalorder %s14, 3
      %p191 = pnand %p189, %p190
      %p192 = pneg %p191
      // Predicated region
      $region37: #{speech_basic_block.1} parent=5 // pred_check
        _
      $region38: #{speech_basic_block.1} parent=5 // pred_check_branch
        %194 = sbr.rel (%p191) target = $region40
      $region39: #{speech_basic_block.1} parent=5 // pred_region
        %s195 = ssub.s32 %s14, 1
        %p196 = scmp.lt.s32.totalorder %s19, 1
        %s197 = scalar_select %p196, %s19, 1
        %s198 = smul.addr %s197, 2
        %s199 = smul.addr %s198, 8
        %s200 = scalar_lea.vmem %s0, %s199
        %p201 = pneg %p40
        %p202 = pneg %p37
        %p203 = pneg %p61
        %p204 = pneg %p58
        %p205 = pneg %p82
        %p206 = pneg %p79
        %p207 = pneg %p103
        %p208 = pneg %p100
        %p209 = pneg %p124
        %p210 = pneg %p121
        %p211 = pneg %p150
        %p212 = pneg %p147
        %s213 = sand.u32 %s137, 1
        %s214 = scalar_lea.sflag [#allocation5], %s213
        %s215 = sand.u32 %s137, 1
        %s216 = smul.addr %s215, 16
        %s217 = scalar_lea.vmem [#allocation4], %s216
        %p218 = scmp.lt.s32.totalorder %s19, 1
        %s219 = scalar_select %p218, %s19, 1
        %s220 = smul.addr %s219, 2
        %s221 = smul.addr %s220, 8
        %s222 = scalar_lea.vmem %s0, %s221
        %v224 = vld [vmem:[%s222] sm:$0xff]
        %v225 = vld [vmem:[%s222 + $0x8] sm:$0xff]
        %vm226 = vcmask 254976
        %227 = vst.msk [vmem:[#allocation2] sm:$0x3] %vm226, 0
        %vm228 = vcmask 257026
        %229 = vst.msk [vmem:[#allocation2 + $0x8] sm:$0xc] %vm228, 0
        %230 = vst.msk [vmem:[#allocation3] sm:$0x3] %vm226, 0
        %231 = vst.msk [vmem:[#allocation3 + $0x8] sm:$0xc] %vm228, 0
        %v232 = vpack.c.bf16 %v225, %v224
        %v234 = vunpack.c.l.b16 %v232
        %v235 = vunpack.c.h.b16 %v232
        %v236 = vpack.c.b16 %v234, %v234
        %v237 = vpack.c.b16 %v235, %v235
        %vm238 = vcmask 1041408
        %vm239 = vcmask 1045508
        %vm240 = vmor %vm238, %vm239
        %v241 = vrot.slane %v236, 6
        %v242 = vrot.slane %v241, 4
        %v243 = vrot.slane %v237, 6
        %v244 = vsel %vm240, %v242, %v243
        %v245 = vrot.slane %v243, 4
        %249 = vst.msk [vmem:[#allocation2] sm:$0xc] %vm228, %v241
        %vm250 = vcmask 257024
        %251 = vst.msk [vmem:[#allocation2 + $0x4] sm:$0xf] %vm250, %v244
        %252 = vst.msk [vmem:[#allocation2 + $0x8] sm:$0x3] %vm226, %v245
        %v253 = vld [vmem:[#allocation2] sm:$0xf]
        %v254 = vld [vmem:[#allocation2 + $0x4] sm:$0xf]
        %v255 = vld [vmem:[#allocation2 + $0x8] sm:$0x1]
        %v256 = vld [vmem:[#allocation2] sm:$0xe]
        %v257 = vld [vmem:[#allocation2 + $0x8] sm:$0x3]
        %v258 = vld [vmem:[#allocation2] sm:$0xc]
        %v259 = vld [vmem:[#allocation2 + $0x8] sm:$0x7]
        %v260 = vld [vmem:[#allocation2] sm:$0x8]
        %v261 = vld [vmem:[#allocation2 + $0x8] sm:$0xf]
        %v264 = vunpack.c.l.b16 %v253
        %v265 = vunpack.c.l.b16 %v254
        %v266 = vpack.c.b16 %v265, %v264
        %v268 = vunpack.c.l.b16 %v255
        %v269 = vpack.c.b16 %v268, %v268
        %vm270 = vsmask.f32 7424
        %v272 = vshrl.u32 %v266, 16
        %v274 = vshll.u32 %v266, 16
        %v276 = vrot.slane %v274, 1
        %v277 = vor.u32 %v272, %v276
        %v279 = vshll.u32 %v269, 16
        %v281 = vrot.slane %v279, 1
        %v282 = vsel %vm270, %v277, %v281
        %283 = vrot.lane.b32.xlu0 %v282, 32
        %v284 = vpop.permute.xlu0 %283
        %v286 = vunpack.c.l.b16 %v256
        %v287 = vpack.c.b16 %v265, %v286
        %vm288 = vcmask 1046528
        %v289 = vrot.slane %v287, 1
        %v290 = vrot.slane %v269, 1
        %v291 = vsel %vm288, %v289, %v290
        %292 = vrot.lane.b32.xlu0 %v291, 64
        %v293 = vpop.permute.xlu0 %292
        %v295 = vunpack.c.l.b16 %v257
        %v296 = vpack.c.b16 %v295, %v295
        %vm297 = vsmask.f32 6400
        %v299 = vshrl.u32 %v287, 16
        %v301 = vrot.slane %v299, 1
        %v302 = vshll.u32 %v287, 16
        %v304 = vrot.slane %v302, 2
        %v305 = vor.u32 %v301, %v304
        %v307 = vshrl.u32 %v296, 16
        %v309 = vrot.slane %v307, 1
        %v310 = vshll.u32 %v296, 16
        %v312 = vrot.slane %v310, 2
        %v313 = vor.u32 %v309, %v312
        %v314 = vsel %vm297, %v305, %v313
        %315 = vrot.lane.b32.xlu0 %v314, 96
        %v316 = vpop.permute.xlu0 %315
        %v318 = vunpack.c.l.b16 %v258
        %v319 = vpack.c.b16 %v265, %v318
        %vm320 = vcmask 1045504
        %v321 = vrot.slane %v319, 2
        %v322 = vrot.slane %v296, 2
        %v323 = vsel %vm320, %v321, %v322
        %v325 = vunpack.c.l.b16 %v259
        %v326 = vpack.c.b16 %v325, %v325
        %vm327 = vsmask.f32 5376
        %v329 = vshrl.u32 %v319, 16
        %v331 = vrot.slane %v329, 2
        %v332 = vshll.u32 %v319, 16
        %v334 = vrot.slane %v332, 3
        %v335 = vor.u32 %v331, %v334
        %v337 = vshrl.u32 %v326, 16
        %v339 = vrot.slane %v337, 2
        %v340 = vshll.u32 %v326, 16
        %v342 = vrot.slane %v340, 3
        %v343 = vor.u32 %v339, %v342
        %v344 = vsel %vm327, %v335, %v343
        %345 = vrot.lane.b32.xlu0 %v344, 32
        %v346 = vpop.permute.xlu0 %345
        %v348 = vunpack.c.l.b16 %v260
        %v349 = vpack.c.b16 %v265, %v348
        %vm350 = vcmask 1044480
        %v351 = vrot.slane %v349, 3
        %v352 = vrot.slane %v326, 3
        %v353 = vsel %vm350, %v351, %v352
        %354 = vrot.lane.b32.xlu0 %v353, 64
        %v355 = vpop.permute.xlu0 %354
        %v357 = vunpack.c.l.b16 %v261
        %v358 = vpack.c.b16 %v357, %v357
        %vm359 = vsmask.f32 4352
        %v361 = vshrl.u32 %v349, 16
        %v363 = vrot.slane %v361, 3
        %v364 = vshll.u32 %v349, 16
        %v366 = vrot.slane %v364, 4
        %v367 = vor.u32 %v363, %v366
        %v369 = vshrl.u32 %v358, 16
        %v371 = vrot.slane %v369, 3
        %v372 = vshll.u32 %v358, 16
        %v374 = vrot.slane %v372, 4
        %v375 = vor.u32 %v371, %v374
        %v376 = vsel %vm359, %v367, %v375
        %377 = vrot.lane.b32.xlu0 %v376, 96
        %v378 = vpop.permute.xlu0 %377
        %v379 = vpack.c.b16 %v357, %v265
        %vm380 = vcmask 261120
        %v382 = vsel %vm380, %v266, %v284
        %vm383 = vcmask 523264
        %v385 = vsel %vm383, %v382, %v293
        %vm386 = vcmask 785408
        %v388 = vsel %vm386, %v385, %v316
        %v392 = vsel %vm380, %v323, %v346
        %v394 = vsel %vm383, %v392, %v355
        %v396 = vsel %vm386, %v394, %v378
        %v398 = vld [vmem:[%s1] sm:$0xf]
        %v399 = vld [vmem:[%s1 + $0x4] sm:$0xf]
        %v400 = vld [vmem:[%s1 + $0x8] sm:$0xf]
        %v401 = vld [vmem:[%s1 + $0xc] sm:$0xf]
        %v402 = vld [vmem:[%s1 + $0x10] sm:$0xf]
        %v403 = vld [vmem:[%s1 + $0x14] sm:$0xf]
        %v404 = vld [vmem:[%s1 + $0x18] sm:$0xf]
        %v405 = vld [vmem:[%s1 + $0x1c] sm:$0xf]
        %v406 = vld [vmem:[%s1 + $0x20] sm:$0xf]
        %v407 = vld [vmem:[%s1 + $0x24] sm:$0xf]
        %v408 = vld [vmem:[%s1 + $0x28] sm:$0xf]
        %v409 = vld [vmem:[%s1 + $0x2c] sm:$0xf]
        %v410 = vld [vmem:[%s1 + $0x30] sm:$0xf]
        %v411 = vld [vmem:[%s1 + $0x34] sm:$0xf]
        %v412 = vld [vmem:[%s1 + $0x38] sm:$0xf]
        %v413 = vld [vmem:[%s1 + $0x3c] sm:$0xf]
        %v414 = vld [vmem:[%s1 + $0x40] sm:$0xf]
        %v415 = vld [vmem:[%s1 + $0x44] sm:$0xf]
        %v416 = vld [vmem:[%s1 + $0x48] sm:$0xf]
        %v417 = vld [vmem:[%s1 + $0x4c] sm:$0xf]
        %v418 = vld [vmem:[%s1 + $0x50] sm:$0xf]
        %v419 = vld [vmem:[%s1 + $0x54] sm:$0xf]
        %v420 = vld [vmem:[%s1 + $0x58] sm:$0xf]
        %v421 = vld [vmem:[%s1 + $0x5c] sm:$0xf]
        %v422 = vld [vmem:[%s1 + $0x60] sm:$0xf]
        %v423 = vld [vmem:[%s1 + $0x64] sm:$0xf]
        %v424 = vld [vmem:[%s1 + $0x68] sm:$0xf]
        %v425 = vld [vmem:[%s1 + $0x6c] sm:$0xf]
        %v426 = vld [vmem:[%s1 + $0x70] sm:$0xf]
        %v427 = vld [vmem:[%s1 + $0x74] sm:$0xf]
        %v428 = vld [vmem:[%s1 + $0x78] sm:$0xf]
        %v429 = vld [vmem:[%s1 + $0x7c] sm:$0xf]
        %v430 = vld [vmem:[%s1 + $0x80] sm:$0xf]
        %v431 = vld [vmem:[%s1 + $0x84] sm:$0xf]
        %v432 = vld [vmem:[%s1 + $0x88] sm:$0xf]
        %v433 = vld [vmem:[%s1 + $0x8c] sm:$0xf]
        %v434 = vld [vmem:[%s2] sm:$0x1]
        %v436 = vlaneseq
        %v437 = vshrl.u32 %v436, 7
        %v438 = vsub.s32 0, %v437
        %v439 = vrot.slane %v434, %v438
        %v477 = vunpack.c.l.b16 %v398
        %v478 = vunpack.c.l.b16 %v399
        %v479 = vunpack.c.l.b16 %v400
        %v480 = vunpack.c.l.b16 %v401
        %v481 = vunpack.c.l.b16 %v402
        %v482 = vunpack.c.l.b16 %v403
        %v483 = vunpack.c.l.b16 %v404
        %v484 = vunpack.c.l.b16 %v405
        %v485 = vunpack.c.l.b16 %v406
        %v486 = vunpack.c.l.b16 %v407
        %v487 = vunpack.c.l.b16 %v408
        %v488 = vunpack.c.l.b16 %v409
        %v489 = vunpack.c.l.b16 %v410
        %v490 = vunpack.c.l.b16 %v411
        %v491 = vunpack.c.l.b16 %v412
        %v492 = vunpack.c.l.b16 %v413
        %v493 = vunpack.c.l.b16 %v414
        %v494 = vunpack.c.l.b16 %v415
        %v495 = vunpack.c.l.b16 %v416
        %v496 = vunpack.c.l.b16 %v417
        %v497 = vunpack.c.l.b16 %v418
        %v498 = vunpack.c.l.b16 %v419
        %v499 = vunpack.c.l.b16 %v420
        %v500 = vunpack.c.l.b16 %v421
        %v501 = vunpack.c.l.b16 %v422
        %v502 = vunpack.c.l.b16 %v423
        %v503 = vunpack.c.l.b16 %v424
        %v504 = vunpack.c.l.b16 %v425
        %v505 = vunpack.c.l.b16 %v426
        %v506 = vunpack.c.l.b16 %v427
        %v507 = vunpack.c.l.b16 %v428
        %v508 = vunpack.c.l.b16 %v429
        %v509 = vunpack.c.l.b16 %v430
        %v510 = vunpack.c.l.b16 %v431
        %v511 = vunpack.c.l.b16 %v432
        %v512 = vunpack.c.l.b16 %v433
        %v513 = vpack.c.b16 %v478, %v477
        %v514 = vpack.c.b16 %v480, %v479
        %v515 = vpack.c.b16 %v482, %v481
        %v516 = vpack.c.b16 %v484, %v483
        %v517 = vpack.c.b16 %v486, %v485
        %v518 = vpack.c.b16 %v488, %v487
        %v519 = vpack.c.b16 %v490, %v489
        %v520 = vpack.c.b16 %v492, %v491
        %v521 = vpack.c.b16 %v494, %v493
        %v522 = vpack.c.b16 %v496, %v495
        %v523 = vpack.c.b16 %v498, %v497
        %v524 = vpack.c.b16 %v500, %v499
        %v525 = vpack.c.b16 %v502, %v501
        %v526 = vpack.c.b16 %v504, %v503
        %v527 = vpack.c.b16 %v506, %v505
        %v528 = vpack.c.b16 %v508, %v507
        %v529 = vpack.c.b16 %v510, %v509
        %v530 = vpack.c.b16 %v512, %v511
        %v550 = vsel %vm380, %v379, 0
        %552 = vmatprep.subr.bf16.mxu0 0
        %553 = vmatpush1.bf16.msra.mxu0 %v513
        %554 = vmatprep.subr.bf16.mxu0 0
        %555 = vmatpush1.bf16.msra.mxu0 %v514
        %556 = vmatprep.subr.bf16.mxu0 0
        %557 = vmatpush1.bf16.msra.mxu0 %v515
        %558 = vmatprep.subr.bf16.mxu0 0
        %559 = vmatpush1.bf16.msra.mxu0 %v516
        %560 = vmatprep.subr.bf16.mxu0 0
        %561 = vmatpush1.bf16.msra.mxu0 %v517
        %562 = vmatprep.subr.bf16.mxu0 0
        %563 = vmatpush1.bf16.msra.mxu0 %v518
        %564 = vmatprep.subr.bf16.mxu0 0
        %565 = vmatpush1.bf16.msra.mxu0 %v519
        %566 = vmatprep.subr.bf16.mxu0 0
        %567 = vmatpush1.bf16.msra.mxu0 %v520
        %568 = vmatprep.subr.bf16.mxu0 0
        %569 = vmatpush1.bf16.msra.mxu0 %v521
        %570 = vmatprep.subr.bf16.mxu0 0
        %571 = vmatpush1.bf16.msra.mxu0 %v522
        %572 = vmatprep.subr.bf16.mxu0 0
        %573 = vmatpush1.bf16.msra.mxu0 %v523
        %574 = vmatprep.subr.bf16.mxu0 0
        %575 = vmatpush1.bf16.msra.mxu0 %v524
        %576 = vmatprep.subr.bf16.mxu0 0
        %577 = vmatpush1.bf16.msra.mxu0 %v525
        %578 = vmatprep.subr.bf16.mxu0 0
        %579 = vmatpush1.bf16.msra.mxu0 %v526
        %580 = vmatprep.subr.bf16.mxu0 0
        %581 = vmatpush1.bf16.msra.mxu0 %v527
        %582 = vmatprep.subr.bf16.mxu0 0
        %583 = vmatpush1.bf16.msra.mxu0 %v528
        %584 = vmatprep.mubr.bf16.mxu0 %v396
        %585 = vmatmul.mubr.bf16.gmra.mrb[0].mxu0 %v388
        %v586 = vpop.f32.mrb[0].mxu0
        %v587 = vadd.f32 %v439, %v586
        %v588 = vpop.f32.mrb[0].mxu0
        %v589 = vpop.f32.mrb[0].mxu0
        %v590 = vadd.f32 %v439, %v589
        %v591 = vpop.f32.mrb[0].mxu0
        %592 = vdwg.mxu0
        %593 = vmatprep.subr.bf16.mxu0 0
        %594 = vmatpush1.bf16.msra.mxu0 %v529
        %595 = vmatprep.subr.bf16.mxu0 0
        %596 = vmatpush1.bf16.msra.mxu0 %v530
        %597 = vmatprep.subr.bf16.mxu0 0
        %598 = vmatpush1.bf16.msra.mxu0 0
        %599 = vmatprep.subr.bf16.mxu0 0
        %600 = vmatpush1.bf16.msra.mxu0 0
        %601 = vmatprep.subr.bf16.mxu0 0
        %602 = vmatpush1.bf16.msra.mxu0 0
        %603 = vmatprep.subr.bf16.mxu0 0
        %604 = vmatpush1.bf16.msra.mxu0 0
        %605 = vmatprep.subr.bf16.mxu0 0
        %606 = vmatpush1.bf16.msra.mxu0 0
        %607 = vmatprep.subr.bf16.mxu0 0
        %608 = vmatpush1.bf16.msra.mxu0 0
        %609 = vmatprep.subr.bf16.mxu0 0
        %610 = vmatpush1.bf16.msra.mxu0 0
        %611 = vmatprep.subr.bf16.mxu0 0
        %612 = vmatpush1.bf16.msra.mxu0 0
        %613 = vmatprep.subr.bf16.mxu0 0
        %614 = vmatpush1.bf16.msra.mxu0 0
        %615 = vmatprep.subr.bf16.mxu0 0
        %616 = vmatpush1.bf16.msra.mxu0 0
        %617 = vmatprep.subr.bf16.mxu0 0
        %618 = vmatpush1.bf16.msra.mxu0 0
        %619 = vmatprep.subr.bf16.mxu0 0
        %620 = vmatpush1.bf16.msra.mxu0 0
        %621 = vmatprep.subr.bf16.mxu0 0
        %622 = vmatpush1.bf16.msra.mxu0 0
        %623 = vmatprep.subr.bf16.mxu0 0
        %624 = vmatpush1.bf16.msra.mxu0 0
        %625 = vmatprep.mubr.bf16.mxu0 0
        %626 = vmatmul.mubr.bf16.gmra.mrb[0].mxu0 %v550
        %v627 = vpop.f32.mrb[0].mxu0
        %v628 = vadd.f32 %v587, %v627
        %v629 = vpop.f32.mrb[0].mxu0
        %v630 = vpop.f32.mrb[0].mxu0
        %v631 = vadd.f32 %v590, %v630
        %v632 = vpop.f32.mrb[0].mxu0
        %633 = vdwg.mxu0
        %v634 = vmax.f32 %v628, 0.0
        %v635 = vmax.f32 %v631, 0.0
        %v636 = vpack.c.bf16 %v635, %v634
        %v638 = vunpack.c.l.b16 %v636
        %v639 = vunpack.c.h.b16 %v636
        %v640 = vpack.c.b16 %v638, %v638
        %v641 = vpack.c.b16 %v639, %v639
        %v642 = vrot.slane %v640, 6
        %v643 = vrot.slane %v642, 4
        %v644 = vrot.slane %v641, 6
        %v645 = vsel %vm240, %v643, %v644
        %v646 = vrot.slane %v644, 4
        %650 = vst.msk [vmem:[#allocation3] sm:$0xc] %vm228, %v642
        %651 = vst.msk [vmem:[#allocation3 + $0x4] sm:$0xf] %vm250, %v645
        %652 = vst.msk [vmem:[#allocation3 + $0x8] sm:$0x3] %vm226, %v646
        %v653 = vld [vmem:[#allocation3] sm:$0xf]
        %v654 = vld [vmem:[#allocation3 + $0x4] sm:$0xf]
        %v655 = vld [vmem:[#allocation3 + $0x8] sm:$0x1]
        %v656 = vld [vmem:[#allocation3] sm:$0xe]
        %v657 = vld [vmem:[#allocation3 + $0x8] sm:$0x3]
        %v658 = vld [vmem:[#allocation3] sm:$0xc]
        %v659 = vld [vmem:[#allocation3 + $0x8] sm:$0x7]
        %v660 = vld [vmem:[#allocation3] sm:$0x8]
        %v661 = vld [vmem:[#allocation3 + $0x8] sm:$0xf]
        %v664 = vunpack.c.l.b16 %v653
        %v665 = vunpack.c.l.b16 %v654
        %v666 = vpack.c.b16 %v665, %v664
        %v668 = vunpack.c.l.b16 %v655
        %v669 = vpack.c.b16 %v668, %v668
        %v671 = vshrl.u32 %v666, 16
        %v673 = vshll.u32 %v666, 16
        %v675 = vrot.slane %v673, 1
        %v676 = vor.u32 %v671, %v675
        %v678 = vshll.u32 %v669, 16
        %v680 = vrot.slane %v678, 1
        %v681 = vsel %vm270, %v676, %v680
        %682 = vrot.lane.b32.xlu0 %v681, 32
        %v683 = vpop.permute.xlu0 %682
        %v685 = vunpack.c.l.b16 %v656
        %v686 = vpack.c.b16 %v665, %v685
        %v687 = vrot.slane %v686, 1
        %v688 = vrot.slane %v669, 1
        %v689 = vsel %vm288, %v687, %v688
        %690 = vrot.lane.b32.xlu0 %v689, 64
        %v691 = vpop.permute.xlu0 %690
        %v693 = vunpack.c.l.b16 %v657
        %v694 = vpack.c.b16 %v693, %v693
        %v696 = vshrl.u32 %v686, 16
        %v698 = vrot.slane %v696, 1
        %v699 = vshll.u32 %v686, 16
        %v701 = vrot.slane %v699, 2
        %v702 = vor.u32 %v698, %v701
        %v704 = vshrl.u32 %v694, 16
        %v706 = vrot.slane %v704, 1
        %v707 = vshll.u32 %v694, 16
        %v709 = vrot.slane %v707, 2
        %v710 = vor.u32 %v706, %v709
        %v711 = vsel %vm297, %v702, %v710
        %712 = vrot.lane.b32.xlu0 %v711, 96
        %v713 = vpop.permute.xlu0 %712
        %v715 = vunpack.c.l.b16 %v658
        %v716 = vpack.c.b16 %v665, %v715
        %v717 = vrot.slane %v716, 2
        %v718 = vrot.slane %v694, 2
        %v719 = vsel %vm320, %v717, %v718
        %v721 = vunpack.c.l.b16 %v659
        %v722 = vpack.c.b16 %v721, %v721
        %v724 = vshrl.u32 %v716, 16
        %v726 = vrot.slane %v724, 2
        %v727 = vshll.u32 %v716, 16
        %v729 = vrot.slane %v727, 3
        %v730 = vor.u32 %v726, %v729
        %v732 = vshrl.u32 %v722, 16
        %v734 = vrot.slane %v732, 2
        %v735 = vshll.u32 %v722, 16
        %v737 = vrot.slane %v735, 3
        %v738 = vor.u32 %v734, %v737
        %v739 = vsel %vm327, %v730, %v738
        %740 = vrot.lane.b32.xlu0 %v739, 32
        %v741 = vpop.permute.xlu0 %740
        %v743 = vunpack.c.l.b16 %v660
        %v744 = vpack.c.b16 %v665, %v743
        %v745 = vrot.slane %v744, 3
        %v746 = vrot.slane %v722, 3
        %v747 = vsel %vm350, %v745, %v746
        %748 = vrot.lane.b32.xlu0 %v747, 64
        %v749 = vpop.permute.xlu0 %748
        %v751 = vunpack.c.l.b16 %v661
        %v752 = vpack.c.b16 %v751, %v751
        %v754 = vshrl.u32 %v744, 16
        %v756 = vrot.slane %v754, 3
        %v757 = vshll.u32 %v744, 16
        %v759 = vrot.slane %v757, 4
        %v760 = vor.u32 %v756, %v759
        %v762 = vshrl.u32 %v752, 16
        %v764 = vrot.slane %v762, 3
        %v765 = vshll.u32 %v752, 16
        %v767 = vrot.slane %v765, 4
        %v768 = vor.u32 %v764, %v767
        %v769 = vsel %vm359, %v760, %v768
        %770 = vrot.lane.b32.xlu0 %v769, 96
        %v771 = vpop.permute.xlu0 %770
        %v772 = vpack.c.b16 %v751, %v665
        %v774 = vsel %vm380, %v666, %v683
        %v776 = vsel %vm383, %v774, %v691
        %v778 = vsel %vm386, %v776, %v713
        %v782 = vsel %vm380, %v719, %v741
        %v784 = vsel %vm383, %v782, %v749
        %v786 = vsel %vm386, %v784, %v771
        %v788 = vld [vmem:[%s3] sm:$0xf]
        %v789 = vld [vmem:[%s3 + $0x4] sm:$0xf]
        %v790 = vld [vmem:[%s3 + $0x8] sm:$0xf]
        %v791 = vld [vmem:[%s3 + $0xc] sm:$0xf]
        %v792 = vld [vmem:[%s3 + $0x10] sm:$0xf]
        %v793 = vld [vmem:[%s3 + $0x14] sm:$0xf]
        %v794 = vld [vmem:[%s3 + $0x18] sm:$0xf]
        %v795 = vld [vmem:[%s3 + $0x1c] sm:$0xf]
        %v796 = vld [vmem:[%s3 + $0x20] sm:$0xf]
        %v797 = vld [vmem:[%s3 + $0x24] sm:$0xf]
        %v798 = vld [vmem:[%s3 + $0x28] sm:$0xf]
        %v799 = vld [vmem:[%s3 + $0x2c] sm:$0xf]
        %v800 = vld [vmem:[%s3 + $0x30] sm:$0xf]
        %v801 = vld [vmem:[%s3 + $0x34] sm:$0xf]
        %v802 = vld [vmem:[%s3 + $0x38] sm:$0xf]
        %v803 = vld [vmem:[%s3 + $0x3c] sm:$0xf]
        %v804 = vld [vmem:[%s3 + $0x40] sm:$0xf]
        %v805 = vld [vmem:[%s3 + $0x44] sm:$0xf]
        %v806 = vld [vmem:[%s3 + $0x48] sm:$0xf]
        %v807 = vld [vmem:[%s3 + $0x4c] sm:$0xf]
        %v808 = vld [vmem:[%s3 + $0x50] sm:$0xf]
        %v809 = vld [vmem:[%s3 + $0x54] sm:$0xf]
        %v810 = vld [vmem:[%s3 + $0x58] sm:$0xf]
        %v811 = vld [vmem:[%s3 + $0x5c] sm:$0xf]
        %v812 = vld [vmem:[%s3 + $0x60] sm:$0xf]
        %v813 = vld [vmem:[%s3 + $0x64] sm:$0xf]
        %v814 = vld [vmem:[%s3 + $0x68] sm:$0xf]
        %v815 = vld [vmem:[%s3 + $0x6c] sm:$0xf]
        %v816 = vld [vmem:[%s3 + $0x70] sm:$0xf]
        %v817 = vld [vmem:[%s3 + $0x74] sm:$0xf]
        %v818 = vld [vmem:[%s3 + $0x78] sm:$0xf]
        %v819 = vld [vmem:[%s3 + $0x7c] sm:$0xf]
        %v820 = vld [vmem:[%s3 + $0x80] sm:$0xf]
        %v821 = vld [vmem:[%s3 + $0x84] sm:$0xf]
        %v822 = vld [vmem:[%s3 + $0x88] sm:$0xf]
        %v823 = vld [vmem:[%s3 + $0x8c] sm:$0xf]
        %v824 = vld [vmem:[%s4] sm:$0x1]
        %v826 = vlaneseq
        %v827 = vshrl.u32 %v826, 7
        %v828 = vsub.s32 0, %v827
        %v829 = vrot.slane %v824, %v828
        %v867 = vunpack.c.l.b16 %v788
        %v868 = vunpack.c.l.b16 %v789
        %v869 = vunpack.c.l.b16 %v790
        %v870 = vunpack.c.l.b16 %v791
        %v871 = vunpack.c.l.b16 %v792
        %v872 = vunpack.c.l.b16 %v793
        %v873 = vunpack.c.l.b16 %v794
        %v874 = vunpack.c.l.b16 %v795
        %v875 = vunpack.c.l.b16 %v796
        %v876 = vunpack.c.l.b16 %v797
        %v877 = vunpack.c.l.b16 %v798
        %v878 = vunpack.c.l.b16 %v799
        %v879 = vunpack.c.l.b16 %v800
        %v880 = vunpack.c.l.b16 %v801
        %v881 = vunpack.c.l.b16 %v802
        %v882 = vunpack.c.l.b16 %v803
        %v883 = vunpack.c.l.b16 %v804
        %v884 = vunpack.c.l.b16 %v805
        %v885 = vunpack.c.l.b16 %v806
        %v886 = vunpack.c.l.b16 %v807
        %v887 = vunpack.c.l.b16 %v808
        %v888 = vunpack.c.l.b16 %v809
        %v889 = vunpack.c.l.b16 %v810
        %v890 = vunpack.c.l.b16 %v811
        %v891 = vunpack.c.l.b16 %v812
        %v892 = vunpack.c.l.b16 %v813
        %v893 = vunpack.c.l.b16 %v814
        %v894 = vunpack.c.l.b16 %v815
        %v895 = vunpack.c.l.b16 %v816
        %v896 = vunpack.c.l.b16 %v817
        %v897 = vunpack.c.l.b16 %v818
        %v898 = vunpack.c.l.b16 %v819
        %v899 = vunpack.c.l.b16 %v820
        %v900 = vunpack.c.l.b16 %v821
        %v901 = vunpack.c.l.b16 %v822
        %v902 = vunpack.c.l.b16 %v823
        %v903 = vpack.c.b16 %v868, %v867
        %v904 = vpack.c.b16 %v870, %v869
        %v905 = vpack.c.b16 %v872, %v871
        %v906 = vpack.c.b16 %v874, %v873
        %v907 = vpack.c.b16 %v876, %v875
        %v908 = vpack.c.b16 %v878, %v877
        %v909 = vpack.c.b16 %v880, %v879
        %v910 = vpack.c.b16 %v882, %v881
        %v911 = vpack.c.b16 %v884, %v883
        %v912 = vpack.c.b16 %v886, %v885
        %v913 = vpack.c.b16 %v888, %v887
        %v914 = vpack.c.b16 %v890, %v889
        %v915 = vpack.c.b16 %v892, %v891
        %v916 = vpack.c.b16 %v894, %v893
        %v917 = vpack.c.b16 %v896, %v895
        %v918 = vpack.c.b16 %v898, %v897
        %v919 = vpack.c.b16 %v900, %v899
        %v920 = vpack.c.b16 %v902, %v901
        %v940 = vsel %vm380, %v772, 0
        %942 = vmatprep.subr.bf16.mxu0 0
        %943 = vmatpush1.bf16.msra.mxu0 %v903
        %944 = vmatprep.subr.bf16.mxu0 0
        %945 = vmatpush1.bf16.msra.mxu0 %v904
        %946 = vmatprep.subr.bf16.mxu0 0
        %947 = vmatpush1.bf16.msra.mxu0 %v905
        %948 = vmatprep.subr.bf16.mxu0 0
        %949 = vmatpush1.bf16.msra.mxu0 %v906
        %950 = vmatprep.subr.bf16.mxu0 0
        %951 = vmatpush1.bf16.msra.mxu0 %v907
        %952 = vmatprep.subr.bf16.mxu0 0
        %953 = vmatpush1.bf16.msra.mxu0 %v908
        %954 = vmatprep.subr.bf16.mxu0 0
        %955 = vmatpush1.bf16.msra.mxu0 %v909
        %956 = vmatprep.subr.bf16.mxu0 0
        %957 = vmatpush1.bf16.msra.mxu0 %v910
        %958 = vmatprep.subr.bf16.mxu0 0
        %959 = vmatpush1.bf16.msra.mxu0 %v911
        %960 = vmatprep.subr.bf16.mxu0 0
        %961 = vmatpush1.bf16.msra.mxu0 %v912
        %962 = vmatprep.subr.bf16.mxu0 0
        %963 = vmatpush1.bf16.msra.mxu0 %v913
        %964 = vmatprep.subr.bf16.mxu0 0
        %965 = vmatpush1.bf16.msra.mxu0 %v914
        %966 = vmatprep.subr.bf16.mxu0 0
        %967 = vmatpush1.bf16.msra.mxu0 %v915
        %968 = vmatprep.subr.bf16.mxu0 0
        %969 = vmatpush1.bf16.msra.mxu0 %v916
        %970 = vmatprep.subr.bf16.mxu0 0
        %971 = vmatpush1.bf16.msra.mxu0 %v917
        %972 = vmatprep.subr.bf16.mxu0 0
        %973 = vmatpush1.bf16.msra.mxu0 %v918
        %974 = vmatprep.mubr.bf16.mxu0 %v786
        %975 = vmatmul.mubr.bf16.gmra.mrb[0].mxu0 %v778
        %v976 = vpop.f32.mrb[0].mxu0
        %v977 = vadd.f32 %v829, %v976
        %v978 = vpop.f32.mrb[0].mxu0
        %v979 = vpop.f32.mrb[0].mxu0
        %v980 = vadd.f32 %v829, %v979
        %v981 = vpop.f32.mrb[0].mxu0
        %982 = vdwg.mxu0
        %983 = vmatprep.subr.bf16.mxu0 0
        %984 = vmatpush1.bf16.msra.mxu0 %v919
        %985 = vmatprep.subr.bf16.mxu0 0
        %986 = vmatpush1.bf16.msra.mxu0 %v920
        %987 = vmatprep.subr.bf16.mxu0 0
        %988 = vmatpush1.bf16.msra.mxu0 0
        %989 = vmatprep.subr.bf16.mxu0 0
        %990 = vmatpush1.bf16.msra.mxu0 0
        %991 = vmatprep.subr.bf16.mxu0 0
        %992 = vmatpush1.bf16.msra.mxu0 0
        %993 = vmatprep.subr.bf16.mxu0 0
        %994 = vmatpush1.bf16.msra.mxu0 0
        %995 = vmatprep.subr.bf16.mxu0 0
        %996 = vmatpush1.bf16.msra.mxu0 0
        %997 = vmatprep.subr.bf16.mxu0 0
        %998 = vmatpush1.bf16.msra.mxu0 0
        %999 = vmatprep.subr.bf16.mxu0 0
        %1000 = vmatpush1.bf16.msra.mxu0 0
        %1001 = vmatprep.subr.bf16.mxu0 0
        %1002 = vmatpush1.bf16.msra.mxu0 0
        %1003 = vmatprep.subr.bf16.mxu0 0
        %1004 = vmatpush1.bf16.msra.mxu0 0
        %1005 = vmatprep.subr.bf16.mxu0 0
        %1006 = vmatpush1.bf16.msra.mxu0 0
        %1007 = vmatprep.subr.bf16.mxu0 0
        %1008 = vmatpush1.bf16.msra.mxu0 0
        %1009 = vmatprep.subr.bf16.mxu0 0
        %1010 = vmatpush1.bf16.msra.mxu0 0
        %1011 = vmatprep.subr.bf16.mxu0 0
        %1012 = vmatpush1.bf16.msra.mxu0 0
        %1013 = vmatprep.subr.bf16.mxu0 0
        %1014 = vmatpush1.bf16.msra.mxu0 0
        %1015 = vmatprep.mubr.bf16.mxu0 0
        %1016 = vmatmul.mubr.bf16.gmra.mrb[0].mxu0 %v940
        %v1017 = vpop.f32.mrb[0].mxu0
        %v1018 = vadd.f32 %v977, %v1017
        %v1019 = vpop.f32.mrb[0].mxu0
        %v1020 = vpop.f32.mrb[0].mxu0
        %v1021 = vadd.f32 %v980, %v1020
        %v1022 = vpop.f32.mrb[0].mxu0
        %1023 = vdwg.mxu0
        %v1024 = vadd.f32 %v1018, %v224
        %v1025 = vadd.f32 %v1021, %v225
        %v1026 = vmax.f32 %v1024, 0.0
        %v1027 = vmax.f32 %v1025, 0.0
        %1028 = vst.msk [vmem:[%s217] sm:$0xff] %vm380, %v1026
        %1029 = vst.msk [vmem:[%s217 + $0x8] sm:$0xff] %vm380, %v1027
        %s1030 = sand.u32 %s137, 1
        %s1031 = scalar_lea.sflag [#allocation5], %s1030
        %s1032 = sand.u32 %s137, 1
        %s1033 = smul.addr %s1032, 16
        %s1034 = scalar_lea.vmem [#allocation4], %s1033
        // Predicated region
        $region41: #{speech_basic_block.1} parent=39 // pred_check
          %p1035 = pneg %p147
        $region42: #{speech_basic_block.1} parent=39 // pred_check_branch
          %1037 = sbr.rel (%p1035) target = $region44
        $region43: #{speech_basic_block.1} parent=39 // pred_region
          %s1039 = ssub.s32 256, 256
          %1040 = vsyncadd %s1031, %s1039
          %s1041 = smul.addr %s19, 2
          %s1042 = smul.addr %s1041, 128
          %s1043 = scalar_lea.hbm %s5, %s1042
          %s1044 = sshll.u32 %s1034, 4
          %s1045 = int_to_ptr.vmem [resolvable:$true] %s1044
          %1050 = dma.vmem_to_hbm [thread:$0]  %s1045, 256, %s1043, %s1031, 128, 128, 8
        $region44: #{speech_basic_block.1} parent=39 // pred_fallthru
          _
      $region40: #{speech_basic_block.1} parent=5 // pred_fallthru
        _
      %p1051 = scmp.le.s32.totalorder 2, %s14
      // Predicated region
      $region45: #{speech_basic_block.1} parent=5 // pred_check
        %p1052 = pneg %p1051
      $region46: #{speech_basic_block.1} parent=5 // pred_check_branch
        %1054 = sbr.rel (%p1052) target = $region48
      $region47: #{speech_basic_block.1} parent=5 // pred_region
        %s1055 = ssub.s32 %s14, 2
        // Predicated region
        $region49: #{speech_basic_block.1} parent=47 // pred_check
          %p1056 = pneg %p153
        $region50: #{speech_basic_block.1} parent=47 // pred_check_branch
          %1058 = sbr.rel (%p1056) target = $region52
        $region51: #{speech_basic_block.1} parent=47 // pred_region
          %s1059 = sand.u32 %s138, 1
          %s1060 = scalar_lea.sflag [#allocation5], %s1059
          %s1061 = sand.u32 %s138, 1
          %s1062 = smul.addr %s1061, 16
          %s1063 = scalar_lea.vmem [#allocation4], %s1062
          %1064 = dma.done %s1060, 256
        $region52: #{speech_basic_block.1} parent=47 // pred_fallthru
          _
      $region48: #{speech_basic_block.1} parent=5 // pred_fallthru
        _
    $region6: #{speech_basic_block.1} parent=1 // loop_footer
      %s18 = sadd.s32 1, %s14
    $region7: #{speech_basic_block.1} parent=1 // loop_footer_branch
      %13 = sbr.rel target = $region3
    $region8: #{speech_basic_block.1} parent=1 // loop_exit
      _
    %1065 = vsyncpa [#allocation5], 1
    %s1066 = scalar_lea.sflag [#allocation5], 1
    %1067 = vsyncpa %s1066, 1

</llo_original>
